<compile_context>
chip_gen: v5e
topology: v5e:2x2
jax: 0.10.0
libtpu: 0.0.40
codegen_flags: <defaults>
</compile_context>

<pallas_src>
import jax
import jax.numpy as jnp
from jax import lax
from jax.experimental import pallas as pl
from jax.experimental.pallas import tpu as pltpu

# Problem sizes (small, consistent with a segmentation forward pass).
N, CIN, H, W = 2, 4, 16, 16
CMID, COUT = 8, 1
KH = KW = 3
KK = KH * KW * CIN           # 36  (im2col contraction dim)
NPIX = N * H * W             # 512 (lane-dense pixel axis)


def segnet_kernel(xT_ref, w1T_ref, b1_ref, w2T_ref, b2_ref, o_ref):
    """Single grid step over the whole (tiny) problem.

    xT_ref : (KK, NPIX)   im2col patches, transposed (pixels on lanes)
    w1T_ref: (CMID, KK)   3x3 conv weights, flattened + transposed
    b1_ref : (CMID, 1)    conv bias (broadcast over lanes)
    w2T_ref: (COUT, CMID) 1x1 projection weights, transposed
    b2_ref : (COUT, 1)    projection bias
    o_ref  : (COUT, NPIX) = (1, 512) lane-dense logits slab
    """
    # conv3x3 as ONE (CMID, KK) x (KK, NPIX) MXU matmul, f32 accumulation.
    h = jnp.dot(w1T_ref[...], xT_ref[...], preferred_element_type=jnp.float32)
    h = jnp.maximum(h + b1_ref[...], 0.0)                       # bias + ReLU (VPU)
    # 1x1 projection to a single channel; result is already lane-dense.
    o_ref[...] = (jnp.dot(w2T_ref[...], h,
                          preferred_element_type=jnp.float32) + b2_ref[...])


def net_forward(x_nchw, w1, b1, w2, b2):
    """x_nchw: (N, CIN, H, W) float32 -> logits (N, COUT, H, W) float32."""
    # ---- wrapper-side layout plumbing (im2col, all plain XLA glue) ----
    x_nhwc = jnp.transpose(x_nchw, (0, 2, 3, 1)).astype(jnp.float32)
    x_pad = jnp.pad(x_nhwc, ((0, 0), (1, 1), (1, 1), (0, 0)))
    # patches[n,h,w,(dy,dx,c)] = x_pad[n, h+dy, w+dx, c]
    patches = jnp.stack(
        [x_pad[:, dy:dy + H, dx:dx + W, :]
         for dy in range(KH) for dx in range(KW)], axis=3)       # (N,H,W,9,CIN)
    patches_t = patches.reshape(NPIX, KK).T                      # (KK, NPIX)

    w1_t = w1.reshape(KK, CMID).T                                # (CMID, KK)
    b1_col = b1.reshape(CMID, 1)
    w2_t = w2.reshape(CMID, COUT).T                              # (COUT, CMID)
    b2_col = b2.reshape(COUT, 1)

    out_flat = pl.pallas_call(
        segnet_kernel,
        out_shape=jax.ShapeDtypeStruct((COUT, NPIX), jnp.float32),
        grid_spec=pltpu.PrefetchScalarGridSpec(
            num_scalar_prefetch=0,
            grid=(1,),
            in_specs=[
                pl.BlockSpec((KK, NPIX), lambda i: (0, 0)),
                pl.BlockSpec((CMID, KK), lambda i: (0, 0)),
                pl.BlockSpec((CMID, 1), lambda i: (0, 0)),
                pl.BlockSpec((COUT, CMID), lambda i: (0, 0)),
                pl.BlockSpec((COUT, 1), lambda i: (0, 0)),
            ],
            out_specs=pl.BlockSpec((COUT, NPIX), lambda i: (0, 0)),
        ),
        compiler_params=pltpu.CompilerParams(
            dimension_semantics=("arbitrary",)),
    )(patches_t, w1_t, b1_col, w2_t, b2_col)

    # COUT == 1, so "NHWC -> NCHW" is a free reshape of the flat slab.
    return out_flat.reshape(N, COUT, H, W)


def reference_forward(x_nchw, w1, b1, w2, b2):
    """Pure-JAX reference (same math) for a correctness check."""
    x_nhwc = jnp.transpose(x_nchw, (0, 2, 3, 1))
    h = lax.conv_general_dilated(
        x_nhwc, w1, window_strides=(1, 1), padding="SAME",
        dimension_numbers=("NHWC", "HWIO", "NHWC"))
    h = jnp.maximum(h + b1, 0.0)
    o = jnp.einsum("nhwc,co->nhwo", h, w2) + b2
    return jnp.transpose(o, (0, 3, 1, 2))


if __name__ == "__main__":
    key = jax.random.PRNGKey(0)
    k_x, k_w1, k_b1, k_w2, k_b2 = jax.random.split(key, 5)

    x = jax.random.normal(k_x, (N, CIN, H, W), dtype=jnp.float32)
    # Deterministic parameter init (HWIO layout for the 3x3 conv).
    w1 = 0.1 * jax.random.normal(k_w1, (KH, KW, CIN, CMID), dtype=jnp.float32)
    b1 = 0.1 * jax.random.normal(k_b1, (CMID,), dtype=jnp.float32)
    w2 = 0.1 * jax.random.normal(k_w2, (CMID, COUT), dtype=jnp.float32)
    b2 = 0.1 * jax.random.normal(k_b2, (COUT,), dtype=jnp.float32)

    out = net_forward(x, w1, b1, w2, b2)
    jax.block_until_ready(out)

    ref = reference_forward(x, w1, b1, w2, b2)
    assert out.shape == (N, COUT, H, W)
    assert jnp.max(jnp.abs(out - ref)) < 1e-4

    print("KERNEL_OK")
</pallas_src>

<mosaic_0001>
module attributes {stable_mosaic.version = 11 : i64} {
  func.func @segnet_kernel(%arg0: i32, %arg1: memref<36x512xf32, #tpu.memory_space<vmem>>, %arg2: memref<8x36xf32, #tpu.memory_space<vmem>>, %arg3: memref<8x1xf32, #tpu.memory_space<vmem>>, %arg4: memref<1x8xf32, #tpu.memory_space<vmem>>, %arg5: memref<1x1xf32, #tpu.memory_space<vmem>>, %arg6: memref<1x512xf32, #tpu.memory_space<vmem>>) attributes {dimension_semantics = [#tpu.dimension_semantics<arbitrary>], iteration_bounds = array<i64: 1>, scalar_prefetch = 0 : i64, scratch_operands = 0 : i64, tpu.core_type = #tpu.core_type<tc>, window_params = [{pipeline_mode = #tpu.pipeline_mode<synchronous>, transform_indices = @transform_0, window_bounds = array<i64: 36, 512>}, {pipeline_mode = #tpu.pipeline_mode<synchronous>, transform_indices = @transform_1, window_bounds = array<i64: 8, 36>}, {pipeline_mode = #tpu.pipeline_mode<synchronous>, transform_indices = @transform_2, window_bounds = array<i64: 8, 1>}, {pipeline_mode = #tpu.pipeline_mode<synchronous>, transform_indices = @transform_3, window_bounds = array<i64: 1, 8>}, {pipeline_mode = #tpu.pipeline_mode<synchronous>, transform_indices = @transform_4, window_bounds = array<i64: 1, 1>}, {pipeline_mode = #tpu.pipeline_mode<synchronous>, transform_indices = @transform_5, window_bounds = array<i64: 1, 512>}]} {
    %c0 = arith.constant 0 : index
    %c0_0 = arith.constant 0 : index
    %0 = vector.load %arg2[%c0, %c0_0] : memref<8x36xf32, #tpu.memory_space<vmem>>, vector<8x36xf32>
    %c0_1 = arith.constant 0 : index
    %c0_2 = arith.constant 0 : index
    %1 = vector.load %arg1[%c0_1, %c0_2] : memref<36x512xf32, #tpu.memory_space<vmem>>, vector<36x512xf32>
    %cst = arith.constant dense<0.000000e+00> : vector<8x512xf32>
    %2 = tpu.matmul %0, %1, %cst {dimension_numbers = #tpu.dot_dimension_numbers<[1], [0], [0], [1], [0, 0, 1, 1], [], []>} : vector<8x36xf32>, vector<36x512xf32>, vector<8x512xf32> -> vector<8x512xf32>
    %c0_3 = arith.constant 0 : index
    %c0_4 = arith.constant 0 : index
    %3 = vector.load %arg3[%c0_3, %c0_4] : memref<8x1xf32, #tpu.memory_space<vmem>>, vector<8x1xf32>
    %4 = vector.broadcast %3 : vector<8x1xf32> to vector<8x512xf32>
    %5 = arith.addf %2, %4 : vector<8x512xf32>
    %cst_5 = arith.constant 0.000000e+00 : f32
    %6 = vector.broadcast %cst_5 : f32 to vector<8x512xf32>
    %7 = arith.maximumf %5, %6 : vector<8x512xf32>
    %c0_6 = arith.constant 0 : index
    %c0_7 = arith.constant 0 : index
    %8 = vector.load %arg4[%c0_6, %c0_7] : memref<1x8xf32, #tpu.memory_space<vmem>>, vector<1x8xf32>
    %cst_8 = arith.constant dense<0.000000e+00> : vector<1x512xf32>
    %9 = tpu.matmul %8, %7, %cst_8 {dimension_numbers = #tpu.dot_dimension_numbers<[1], [0], [0], [1], [0, 0, 1, 1], [], []>} : vector<1x8xf32>, vector<8x512xf32>, vector<1x512xf32> -> vector<1x512xf32>
    %c0_9 = arith.constant 0 : index
    %c0_10 = arith.constant 0 : index
    %10 = vector.load %arg5[%c0_9, %c0_10] : memref<1x1xf32, #tpu.memory_space<vmem>>, vector<1x1xf32>
    %11 = vector.broadcast %10 : vector<1x1xf32> to vector<1x512xf32>
    %12 = arith.addf %9, %11 : vector<1x512xf32>
    %c0_11 = arith.constant 0 : index
    %c0_12 = arith.constant 0 : index
    %13 = vector.load %arg6[%c0_11, %c0_12] : memref<1x512xf32, #tpu.memory_space<vmem>>, vector<1x512xf32>
    tpu.vector_store %arg6[%c0_11, %c0_12], %12 {strides = array<i32>} : memref<1x512xf32, #tpu.memory_space<vmem>>, vector<1x512xf32>,
    return
  }
  func.func @transform_0(%arg0: i32) -> (i32, i32) {
    %c0_i32 = arith.constant 0 : i32
    %c0_i32_0 = arith.constant 0 : i32
    %c0_i32_1 = arith.constant 0 : i32
    return %c0_i32, %c0_i32_0 : i32, i32
  }
  func.func @transform_1(%arg0: i32) -> (i32, i32) {
    %c0_i32 = arith.constant 0 : i32
    %c0_i32_0 = arith.constant 0 : i32
    %c0_i32_1 = arith.constant 0 : i32
    return %c0_i32, %c0_i32_0 : i32, i32
  }
  func.func @transform_2(%arg0: i32) -> (i32, i32) {
    %c0_i32 = arith.constant 0 : i32
    %c0_i32_0 = arith.constant 0 : i32
    %c0_i32_1 = arith.constant 0 : i32
    return %c0_i32, %c0_i32_0 : i32, i32
  }
  func.func @transform_3(%arg0: i32) -> (i32, i32) {
    %c0_i32 = arith.constant 0 : i32
    %c0_i32_0 = arith.constant 0 : i32
    %c0_i32_1 = arith.constant 0 : i32
    return %c0_i32, %c0_i32_0 : i32, i32
  }
  func.func @transform_4(%arg0: i32) -> (i32, i32) {
    %c0_i32 = arith.constant 0 : i32
    %c0_i32_0 = arith.constant 0 : i32
    %c0_i32_1 = arith.constant 0 : i32
    return %c0_i32, %c0_i32_0 : i32, i32
  }
  func.func @transform_5(%arg0: i32) -> (i32, i32) {
    %c0_i32 = arith.constant 0 : i32
    %c0_i32_0 = arith.constant 0 : i32
    %c0_i32_1 = arith.constant 0 : i32
    return %c0_i32, %c0_i32_0 : i32, i32
  }
}

</mosaic_0001>

<llo_original>
// kernel: tpu_custom_call.1
$region0: #{tpu_custom_call.1}
  #allocation0 [shape = 'u32[]', space=smem, size = 0x4, offset = 0x4, fixed_abs, tag = 'smem constant byte address 0x4 - core index']
  #allocation1 [shape = 'u32[72,128]{1,0:T(1,128)}', space=vmem, size = 0x9000, scoped, tag = 'internal scratch']
  #allocation2 [shape = 'f32[1,1]{1,0:T(1,128)S(1)}', space=vmem, size = 0x200, scoped, tag = 'scoped memory for tpu_custom_call.1']
  %s0 = inlined_call_operand.hbm [shape: f32[36,512], index: 0, kind: input, shape index: {}]
  %s1 = inlined_call_operand.vmem [shape: f32[8,36], index: 1, kind: input, shape index: {}]
  %s2 = inlined_call_operand.vmem [shape: f32[8,1], index: 2, kind: input, shape index: {}]
  %s3 = inlined_call_operand.vmem [shape: f32[1,8], index: 3, kind: input, shape index: {}]
  %s4 = inlined_call_operand.<no memory space> [shape: f32[1,1], index: 4, kind: input, shape index: {}]
  %s5 = inlined_call_operand.hbm [shape: f32[1,512], index: 5, kind: output, shape index: {}]
  %s6 = sld [smem:[#allocation0]]
  $region34: #{tpu_custom_call.1} parent=0
    _
  %s8 = ssub.s32 1, %s6
  %s9 = scalar_select 0, %s8, %s6
  %v10 = vstv %s4
  %11 = vst [vmem:[#allocation2] sm:$0x1] %v10
  $region1: #{tpu_custom_call.1} parent=0
    #allocation3 [shape = 'u8[81920]{0}', space=vmem, size = 0x14000, scoped, tag = 'input window, operand 0, single buffered']
    #allocation4 [shape = 's32[1]{0}', space=sflag, size = 0x4, scoped, tag = 'scoped memory for tpu_custom_call.1']
    #allocation5 [shape = 's32[1]{0}', space=sflag, size = 0x4, scoped, tag = 'scoped memory for tpu_custom_call.1']
    #allocation6 [shape = 'u8[2048]{0}', space=vmem, size = 0x800, scoped, tag = 'output window, operand 0, single buffered']
    %12 = vsyncpa [#allocation4], 0
    %13 = vsyncpa [#allocation5], 0
    // Predicated region
    $region2: #{tpu_custom_call.1} parent=1 // pred_check
      _
    $region3: #{tpu_custom_call.1} parent=1 // pred_check_branch
      %15 = sbr.rel (0) target = $region5
    $region4: #{tpu_custom_call.1} parent=1 // pred_region
      %17 = vsyncadd [#allocation4], 0
      %s18 = sshll.u32 %s0, 4
      %s19 = int_to_ptr.hbm [resolvable:$true] %s18
      %s20 = sshll.u32 [#allocation3], 4
      %s21 = int_to_ptr.vmem [resolvable:$true] %s20
      %26 = dma.hbm_to_vmem [thread:$0]  %s19, 2560, %s21, [#allocation4], 512, 512, 32
    $region5: #{tpu_custom_call.1} parent=1 // pred_fallthru
      _
    // Predicated region
    $region6: #{tpu_custom_call.1} parent=1 // pred_check
      _
    $region7: #{tpu_custom_call.1} parent=1 // pred_check_branch
      %28 = sbr.rel (0) target = $region9
    $region8: #{tpu_custom_call.1} parent=1 // pred_region
      _
    $region9: #{tpu_custom_call.1} parent=1 // pred_fallthru
      _
    // Predicated region
    $region10: #{tpu_custom_call.1} parent=1 // pred_check
      _
    $region11: #{tpu_custom_call.1} parent=1 // pred_check_branch
      %30 = sbr.rel (0) target = $region13
    $region12: #{tpu_custom_call.1} parent=1 // pred_region
      _
    $region13: #{tpu_custom_call.1} parent=1 // pred_fallthru
      _
    // Predicated region
    $region14: #{tpu_custom_call.1} parent=1 // pred_check
      _
    $region15: #{tpu_custom_call.1} parent=1 // pred_check_branch
      %32 = sbr.rel (0) target = $region17
    $region16: #{tpu_custom_call.1} parent=1 // pred_region
      _
    $region17: #{tpu_custom_call.1} parent=1 // pred_fallthru
      _
    // Predicated region
    $region18: #{tpu_custom_call.1} parent=1 // pred_check
      _
    $region19: #{tpu_custom_call.1} parent=1 // pred_check_branch
      %34 = sbr.rel (0) target = $region21
    $region20: #{tpu_custom_call.1} parent=1 // pred_region
      _
    $region21: #{tpu_custom_call.1} parent=1 // pred_fallthru
      _
    // Predicated region
    $region22: #{tpu_custom_call.1} parent=1 // pred_check
      _
    $region23: #{tpu_custom_call.1} parent=1 // pred_check_branch
      %36 = sbr.rel (0) target = $region25
    $region24: #{tpu_custom_call.1} parent=1 // pred_region
      %38 = dma.done [#allocation4], 2560
    $region25: #{tpu_custom_call.1} parent=1 // pred_fallthru
      _
    %v39 = vld [vmem:[%s1] sm:$0xff]
    %v40 = vld [vmem:[#allocation3] sm:$0xff]
    %v41 = vld [vmem:[#allocation3 + $0x8] sm:$0xff]
    %v42 = vld [vmem:[#allocation3 + $0x10] sm:$0xff]
    %v43 = vld [vmem:[#allocation3 + $0x18] sm:$0xff]
    %v44 = vld [vmem:[#allocation3 + $0x20] sm:$0xff]
    %v45 = vld [vmem:[#allocation3 + $0x28] sm:$0xff]
    %v46 = vld [vmem:[#allocation3 + $0x30] sm:$0xff]
    %v47 = vld [vmem:[#allocation3 + $0x38] sm:$0xff]
    %v48 = vld [vmem:[#allocation3 + $0x40] sm:$0xff]
    %v49 = vld [vmem:[#allocation3 + $0x48] sm:$0xff]
    %v50 = vld [vmem:[#allocation3 + $0x50] sm:$0xff]
    %v51 = vld [vmem:[#allocation3 + $0x58] sm:$0xff]
    %v52 = vld [vmem:[#allocation3 + $0x60] sm:$0xff]
    %v53 = vld [vmem:[#allocation3 + $0x68] sm:$0xff]
    %v54 = vld [vmem:[#allocation3 + $0x70] sm:$0xff]
    %v55 = vld [vmem:[#allocation3 + $0x78] sm:$0xff]
    %v56 = vld [vmem:[#allocation3 + $0x80] sm:$0xf]
    %v57 = vld [vmem:[#allocation3 + $0x88] sm:$0xf]
    %v58 = vld [vmem:[#allocation3 + $0x90] sm:$0xf]
    %v59 = vld [vmem:[#allocation3 + $0x98] sm:$0xf]
    %v60 = vld [vmem:[%s2] sm:$0xff]
    %62 = vset.pattern.permute.xlu0 0
    %63 = vperm.xlu0 %62, %v60
    %v64 = vpop.permute.xlu0 %63
    %vm66 = vcmask 293888
    %v68 = vsel %vm66, %v39, 0
    %vm70 = vcmask 1043456
    %v72 = vsel %vm70, %v56, 0
    %v75 = vsel %vm70, %v57, 0
    %v78 = vsel %vm70, %v58, 0
    %v81 = vsel %vm70, %v59, 0
    %83 = vmatpush.msra.mxu0 0.0
    %84 = vmatpush.msra.mxu0 0.0
    %85 = vmatpush.msra.mxu0 0.0
    %86 = vmatpush.msra.mxu0 0.0
    %87 = vmatpush.msra.mxu0 0.0
    %88 = vmatpush.msra.mxu0 0.0
    %89 = vmatpush.msra.mxu0 0.0
    %90 = vmatpush.msra.mxu0 0.0
    %91 = vmatpush.msra.mxu0 0.0
    %92 = vmatpush.msra.mxu0 0.0
    %93 = vmatpush.msra.mxu0 0.0
    %94 = vmatpush.msra.mxu0 %v72
    %95 = vmatpush.msra.mxu0 %v52
    %96 = vmatpush.msra.mxu0 %v48
    %97 = vmatpush.msra.mxu0 %v44
    %98 = vmatpush.msra.mxu0 %v40
    %99 = vmatmul.f32.gmra.mxu0 %v68
    %v100 = vpop.f32.mrf.mxu0
    %v101 = vadd.f32 %v64, %v100
    %102 = vdwg.mxu0
    %103 = vmatpush.msra.mxu0 0.0
    %104 = vmatpush.msra.mxu0 0.0
    %105 = vmatpush.msra.mxu0 0.0
    %106 = vmatpush.msra.mxu0 0.0
    %107 = vmatpush.msra.mxu0 0.0
    %108 = vmatpush.msra.mxu0 0.0
    %109 = vmatpush.msra.mxu0 0.0
    %110 = vmatpush.msra.mxu0 0.0
    %111 = vmatpush.msra.mxu0 0.0
    %112 = vmatpush.msra.mxu0 0.0
    %113 = vmatpush.msra.mxu0 0.0
    %114 = vmatpush.msra.mxu0 %v75
    %115 = vmatpush.msra.mxu0 %v53
    %116 = vmatpush.msra.mxu0 %v49
    %117 = vmatpush.msra.mxu0 %v45
    %118 = vmatpush.msra.mxu0 %v41
    %119 = vmatmul.f32.gmra.mxu0 %v68
    %v120 = vpop.f32.mrf.mxu0
    %v121 = vadd.f32 %v64, %v120
    %122 = vdwg.mxu0
    %123 = vmatpush.msra.mxu0 0.0
    %124 = vmatpush.msra.mxu0 0.0
    %125 = vmatpush.msra.mxu0 0.0
    %126 = vmatpush.msra.mxu0 0.0
    %127 = vmatpush.msra.mxu0 0.0
    %128 = vmatpush.msra.mxu0 0.0
    %129 = vmatpush.msra.mxu0 0.0
    %130 = vmatpush.msra.mxu0 0.0
    %131 = vmatpush.msra.mxu0 0.0
    %132 = vmatpush.msra.mxu0 0.0
    %133 = vmatpush.msra.mxu0 0.0
    %134 = vmatpush.msra.mxu0 %v78
    %135 = vmatpush.msra.mxu0 %v54
    %136 = vmatpush.msra.mxu0 %v50
    %137 = vmatpush.msra.mxu0 %v46
    %138 = vmatpush.msra.mxu0 %v42
    %139 = vmatmul.f32.gmra.mxu0 %v68
    %v140 = vpop.f32.mrf.mxu0
    %v141 = vadd.f32 %v64, %v140
    %142 = vdwg.mxu0
    %143 = vmatpush.msra.mxu0 0.0
    %144 = vmatpush.msra.mxu0 0.0
    %145 = vmatpush.msra.mxu0 0.0
    %146 = vmatpush.msra.mxu0 0.0
    %147 = vmatpush.msra.mxu0 0.0
    %148 = vmatpush.msra.mxu0 0.0
    %149 = vmatpush.msra.mxu0 0.0
    %150 = vmatpush.msra.mxu0 0.0
    %151 = vmatpush.msra.mxu0 0.0
    %152 = vmatpush.msra.mxu0 0.0
    %153 = vmatpush.msra.mxu0 0.0
    %154 = vmatpush.msra.mxu0 %v81
    %155 = vmatpush.msra.mxu0 %v55
    %156 = vmatpush.msra.mxu0 %v51
    %157 = vmatpush.msra.mxu0 %v47
    %158 = vmatpush.msra.mxu0 %v43
    %159 = vmatmul.f32.gmra.mxu0 %v68
    %v160 = vpop.f32.mrf.mxu0
    %v161 = vadd.f32 %v64, %v160
    %162 = vdwg.mxu0
    %v163 = vmax.f32 %v101, 0.0
    %v164 = vmax.f32 %v121, 0.0
    %v165 = vmax.f32 %v141, 0.0
    %v166 = vmax.f32 %v161, 0.0
    %v167 = vld [vmem:[%s3] sm:$0x1]
    %v168 = vld [vmem:[#allocation2] sm:$0x1]
    %170 = vset.pattern.permute.xlu0 0
    %171 = vperm.xlu0 %170, %v168
    %v172 = vpop.permute.xlu0 %171
    %v174 = vperm.slane %v172, 0
    %vm175 = vcmask 64512
    %v177 = vsel %vm175, %v167, 0
    %179 = vmatpush.msra.mxu0 0.0
    %180 = vmatpush.msra.mxu0 0.0
    %181 = vmatpush.msra.mxu0 0.0
    %182 = vmatpush.msra.mxu0 0.0
    %183 = vmatpush.msra.mxu0 0.0
    %184 = vmatpush.msra.mxu0 0.0
    %185 = vmatpush.msra.mxu0 0.0
    %186 = vmatpush.msra.mxu0 0.0
    %187 = vmatpush.msra.mxu0 0.0
    %188 = vmatpush.msra.mxu0 0.0
    %189 = vmatpush.msra.mxu0 0.0
    %190 = vmatpush.msra.mxu0 0.0
    %191 = vmatpush.msra.mxu0 0.0
    %192 = vmatpush.msra.mxu0 0.0
    %193 = vmatpush.msra.mxu0 0.0
    %194 = vmatpush.msra.mxu0 %v163
    %195 = vmatmul.f32.gmra.mxu0 %v177
    %v196 = vpop.f32.mrf.mxu0
    %v197 = vadd.f32 %v174, %v196
    %198 = vdwg.mxu0
    %199 = vmatpush.msra.mxu0 0.0
    %200 = vmatpush.msra.mxu0 0.0
    %201 = vmatpush.msra.mxu0 0.0
    %202 = vmatpush.msra.mxu0 0.0
    %203 = vmatpush.msra.mxu0 0.0
    %204 = vmatpush.msra.mxu0 0.0
    %205 = vmatpush.msra.mxu0 0.0
    %206 = vmatpush.msra.mxu0 0.0
    %207 = vmatpush.msra.mxu0 0.0
    %208 = vmatpush.msra.mxu0 0.0
    %209 = vmatpush.msra.mxu0 0.0
    %210 = vmatpush.msra.mxu0 0.0
    %211 = vmatpush.msra.mxu0 0.0
    %212 = vmatpush.msra.mxu0 0.0
    %213 = vmatpush.msra.mxu0 0.0
    %214 = vmatpush.msra.mxu0 %v164
    %215 = vmatmul.f32.gmra.mxu0 %v177
    %v216 = vpop.f32.mrf.mxu0
    %v217 = vadd.f32 %v174, %v216
    %218 = vdwg.mxu0
    %219 = vmatpush.msra.mxu0 0.0
    %220 = vmatpush.msra.mxu0 0.0
    %221 = vmatpush.msra.mxu0 0.0
    %222 = vmatpush.msra.mxu0 0.0
    %223 = vmatpush.msra.mxu0 0.0
    %224 = vmatpush.msra.mxu0 0.0
    %225 = vmatpush.msra.mxu0 0.0
    %226 = vmatpush.msra.mxu0 0.0
    %227 = vmatpush.msra.mxu0 0.0
    %228 = vmatpush.msra.mxu0 0.0
    %229 = vmatpush.msra.mxu0 0.0
    %230 = vmatpush.msra.mxu0 0.0
    %231 = vmatpush.msra.mxu0 0.0
    %232 = vmatpush.msra.mxu0 0.0
    %233 = vmatpush.msra.mxu0 0.0
    %234 = vmatpush.msra.mxu0 %v165
    %235 = vmatmul.f32.gmra.mxu0 %v177
    %v236 = vpop.f32.mrf.mxu0
    %v237 = vadd.f32 %v174, %v236
    %238 = vdwg.mxu0
    %239 = vmatpush.msra.mxu0 0.0
    %240 = vmatpush.msra.mxu0 0.0
    %241 = vmatpush.msra.mxu0 0.0
    %242 = vmatpush.msra.mxu0 0.0
    %243 = vmatpush.msra.mxu0 0.0
    %244 = vmatpush.msra.mxu0 0.0
    %245 = vmatpush.msra.mxu0 0.0
    %246 = vmatpush.msra.mxu0 0.0
    %247 = vmatpush.msra.mxu0 0.0
    %248 = vmatpush.msra.mxu0 0.0
    %249 = vmatpush.msra.mxu0 0.0
    %250 = vmatpush.msra.mxu0 0.0
    %251 = vmatpush.msra.mxu0 0.0
    %252 = vmatpush.msra.mxu0 0.0
    %253 = vmatpush.msra.mxu0 0.0
    %254 = vmatpush.msra.mxu0 %v166
    %255 = vmatmul.f32.gmra.mxu0 %v177
    %v256 = vpop.f32.mrf.mxu0
    %v257 = vadd.f32 %v174, %v256
    %258 = vdwg.mxu0
    %v263 = vrot.slane %v217, 7
    %v264 = vrot.slane %v237, 6
    %v265 = vrot.slane %v257, 5
    %vm266 = vcmask 1040384
    %v267 = vsel %vm266, %v197, %v263
    %vm268 = vcmask 1042434
    %v269 = vsel %vm268, %v264, %v265
    %vm270 = vcmask 1041408
    %v271 = vsel %vm270, %v267, %v269
    %v273 = vlaneseq
    %vm274 = vcmp.ge.s32.totalorder %v273, 0
    %vm275 = vcmp.lt.s32.totalorder %v273, 512
    %vm276 = vmand %vm274, %vm275
    %277 = vst.msk [vmem:[#allocation6] sm:$0xf] %vm276, %v271
    // Predicated region
    $region26: #{tpu_custom_call.1} parent=1 // pred_check
      _
    $region27: #{tpu_custom_call.1} parent=1 // pred_check_branch
      %279 = sbr.rel (0) target = $region29
    $region28: #{tpu_custom_call.1} parent=1 // pred_region
      %281 = vsyncadd [#allocation5], 0
      %s283 = sshll.u32 [#allocation6], 4
      %s284 = int_to_ptr.vmem [resolvable:$true] %s283
      %s285 = sshll.u32 %s5, 4
      %s286 = int_to_ptr.hbm [resolvable:$true] %s285
      %288 = dma.vmem_to_hbm [thread:$0]  %s284, 64, %s286, [#allocation5]
    $region29: #{tpu_custom_call.1} parent=1 // pred_fallthru
      _
    // Predicated region
    $region30: #{tpu_custom_call.1} parent=1 // pred_check
      _
    $region31: #{tpu_custom_call.1} parent=1 // pred_check_branch
      %290 = sbr.rel (0) target = $region33
    $region32: #{tpu_custom_call.1} parent=1 // pred_region
      %292 = dma.done [#allocation5], 64
    $region33: #{tpu_custom_call.1} parent=1 // pred_fallthru
      _
    %293 = vsyncpa [#allocation4], 1
    %294 = vsyncpa [#allocation5], 1

</llo_original>
